<compile_context>
chip_gen: v7x
topology: tpu7x:2x2x1
jax: 0.10.0
libtpu: 0.0.40
codegen_flags: <defaults>
</compile_context>

<pallas_src>
import functools

import jax
import jax.numpy as jnp
from jax.experimental import pallas as pl
from jax.experimental.pallas import tpu as pltpu


_OUT_LANES = 128  # lane-dense output width (q1 in col 0, q2 in col 1)


# ---------------------------------------------------------------------------
# Kernel
# ---------------------------------------------------------------------------
def _make_critic_kernel(num_layers, has_hidden):
    """Twin-Q MLP kernel body (both heads computed per-head, no zero-padding
    inside the matmuls except the lane-dense final projection)."""

    def kernel(*refs):
        if has_hidden:
            sa_ref, w0_ref, wh_ref, wf_ref, b_ref, bf_ref, out_ref = refs
        else:
            sa_ref, w0_ref, wf_ref, b_ref, bf_ref, out_ref = refs
            wh_ref = None

        compute_dtype = w0_ref.dtype
        sa = sa_ref[...].astype(compute_dtype)          # (tile_b, S+A)

        total = bf_ref[...].astype(jnp.float32)         # (1, 128) final bias
        for head in range(2):
            # Layer 0: (tile_b, S+A) @ (S+A, H), f32 accumulate.
            h = jnp.dot(sa, w0_ref[head], preferred_element_type=jnp.float32)
            h = jnp.maximum(h + b_ref[0, head].astype(jnp.float32), 0.0)

            # Hidden layers: per-head (H, H) dots (no zero blocks).
            if has_hidden:
                for li in range(num_layers - 1):
                    h = jnp.dot(h.astype(compute_dtype), wh_ref[li, head],
                                preferred_element_type=jnp.float32)
                    h = jnp.maximum(
                        h + b_ref[li + 1, head].astype(jnp.float32), 0.0)

            # Final projection into a lane-dense 128-wide slab (col head).
            total = total + jnp.dot(h.astype(compute_dtype), wf_ref[head],
                                    preferred_element_type=jnp.float32)

        out_ref[...] = total.astype(out_ref.dtype)

    return kernel


# ---------------------------------------------------------------------------
# Parameter init (mirrors Critic.__init__ / weights_init_) and packing
# ---------------------------------------------------------------------------
def _xavier_uniform(key, fan_in, fan_out, gain=1.0, dtype=jnp.float32):
    a = gain * jnp.sqrt(6.0 / (fan_in + fan_out))
    return jax.random.uniform(key, (fan_in, fan_out), dtype=dtype,
                              minval=-a, maxval=a)


def init_critic_params(key, state_dim, action_dim, hidden_dim, num_layers,
                       dtype=jnp.float32):
    """Per-head params in PyTorch layout: list of (W[in,out], b[out])."""
    input_dim = state_dim + action_dim
    dims = [input_dim] + [hidden_dim] * num_layers + [1]

    params = {"q1": [], "q2": []}
    for head in ("q1", "q2"):
        for li in range(len(dims) - 1):
            key, wk = jax.random.split(key)
            w = _xavier_uniform(wk, dims[li], dims[li + 1], dtype=dtype)
            b = jnp.zeros((dims[li + 1],), dtype=dtype)  # constant_(bias, 0)
            params[head].append((w, b))
    return params


def pack_critic_params(params):
    """Packs the twin heads into the tensors consumed by the kernel."""
    q1, q2 = params["q1"], params["q2"]
    num_layers = len(q1) - 1
    H = q1[0][0].shape[1]
    dtype = q1[0][0].dtype

    # Layer 0: heads stacked along a leading axis -> (2, S+A, H).
    w0 = jnp.stack([q1[0][0], q2[0][0]], axis=0)

    # Hidden layers: (L-1, 2, H, H) — per-head weights, no zero blocks.
    if num_layers > 1:
        wh = jnp.stack(
            [jnp.stack([q1[li][0], q2[li][0]], axis=0)
             for li in range(1, num_layers)], axis=0)
    else:
        wh = None

    # Final layer: lane-dense (2, H, 128); head 0 -> column 0, head 1 -> col 1.
    wf = jnp.zeros((2, H, _OUT_LANES), dtype=dtype)
    wf = wf.at[0, :, 0].set(q1[-1][0][:, 0])
    wf = wf.at[1, :, 1].set(q2[-1][0][:, 0])

    # Layer-0 + hidden biases: (num_layers, 2, 1, H).
    b = jnp.zeros((num_layers, 2, 1, H), dtype=dtype)
    for li in range(num_layers):
        b = b.at[li, 0, 0].set(q1[li][1])
        b = b.at[li, 1, 0].set(q2[li][1])

    # Final bias, lane-dense (1, 128).
    bf = jnp.zeros((1, _OUT_LANES), dtype=dtype)
    bf = bf.at[0, 0].set(q1[-1][1][0])
    bf = bf.at[0, 1].set(q2[-1][1][0])

    return {"w0": w0, "wh": wh, "wf": wf, "b": b, "bf": bf}


# ---------------------------------------------------------------------------
# Forward
# ---------------------------------------------------------------------------
_VMEM_BUDGET = 48 << 20  # conservative: fits v7x 64 MiB physical per TC


def _pick_batch_tile(B, in_dim, hidden_dim, act_itemsize, weight_bytes):
    """Largest batch tile (multiple of 8, <=4096) whose footprint fits VMEM;
    single grid step whenever the whole (rounded-up) batch fits."""
    b8 = max(8, ((B + 7) // 8) * 8)

    def fits(t):
        act_bytes = t * (2 * in_dim * act_itemsize          # double-buffered sa
                         + 2 * _OUT_LANES * act_itemsize    # double-buffered out
                         + 3 * hidden_dim * 4)              # live f32 activations
        return 2 * weight_bytes + act_bytes <= _VMEM_BUDGET

    if b8 <= 4096 and fits(b8):
        return b8                                 # single grid step
    for t in (4096, 2048, 1024, 512, 256, 128, 64, 32, 16, 8):
        if t <= b8 and fits(t):
            return t
    return 8


@functools.partial(jax.jit, static_argnames=("num_layers",))
def critic_forward(state, action, packed, num_layers):
    B = state.shape[0]
    in_dim = state.shape[1] + action.shape[1]
    out_dtype = state.dtype

    has_hidden = packed["wh"] is not None
    kernel = _make_critic_kernel(num_layers, has_hidden)

    # Fold the torch.cat into one lane-contiguous input, in the MXU dtype.
    sa = jnp.concatenate([state, action], axis=1).astype(packed["w0"].dtype)

    H = packed["w0"].shape[2]
    weight_bytes = sum(int(x.size) * x.dtype.itemsize
                       for x in jax.tree_util.tree_leaves(packed))

    tile_b = _pick_batch_tile(B, in_dim, H, sa.dtype.itemsize, weight_bytes)
    num_steps = -(-B // tile_b)
    B_pad = num_steps * tile_b
    if B_pad != B:
        sa = jnp.pad(sa, ((0, B_pad - B), (0, 0)))

    def resident(x):
        nd = x.ndim
        return pl.BlockSpec(x.shape, lambda i, _nd=nd: (0,) * _nd)

    in_specs = [pl.BlockSpec((tile_b, in_dim), lambda i: (i, 0)),
                resident(packed["w0"])]
    inputs = [sa, packed["w0"]]
    if has_hidden:
        in_specs.append(resident(packed["wh"]))
        inputs.append(packed["wh"])
    in_specs += [resident(packed["wf"]), resident(packed["b"]),
                 resident(packed["bf"])]
    inputs += [packed["wf"], packed["b"], packed["bf"]]

    # Advisory cost estimate so XLA can overlap this small call.
    flops = 2 * B_pad * 2 * (in_dim * H
                             + (num_layers - 1) * H * H
                             + H * _OUT_LANES)
    bytes_accessed = (weight_bytes
                      + int(sa.size) * sa.dtype.itemsize
                      + B_pad * _OUT_LANES * jnp.dtype(out_dtype).itemsize)
    cost = pl.CostEstimate(flops=int(flops), transcendentals=0,
                           bytes_accessed=int(bytes_accessed))

    # Explicit scoped-VMEM limit (v5e default 16 MiB / v6e 32 MiB are too
    # small to keep weights resident for larger H; v7x physical is 64 MiB).
    act_tile_bytes = tile_b * (2 * in_dim * sa.dtype.itemsize
                               + 2 * _OUT_LANES * jnp.dtype(out_dtype).itemsize
                               + 3 * H * 4)
    vmem_need = 2 * weight_bytes + act_tile_bytes + (4 << 20)
    vmem_limit = max(32 << 20, min(56 << 20, int(vmem_need)))

    out = pl.pallas_call(
        kernel,
        out_shape=jax.ShapeDtypeStruct((B_pad, _OUT_LANES), out_dtype),
        grid=(num_steps,),
        in_specs=in_specs,
        out_specs=pl.BlockSpec((tile_b, _OUT_LANES), lambda i: (i, 0)),
        compiler_params=pltpu.CompilerParams(
            dimension_semantics=(("parallel",) if num_steps > 1
                                 else ("arbitrary",)),
            vmem_limit_bytes=vmem_limit),
        cost_estimate=cost,
    )(*inputs)

    return out[:B, 0:1], out[:B, 1:2]


# ---------------------------------------------------------------------------
# Pure-JAX reference (original per-head formulation) for correctness checking
# ---------------------------------------------------------------------------
def _reference_forward(state, action, params):
    sa = jnp.concatenate([state, action], axis=1)

    def mlp(layers):
        h = sa
        for li, (w, b) in enumerate(layers):
            h = h @ w + b
            if li < len(layers) - 1:
                h = jnp.maximum(h, 0.0)
        return h

    return mlp(params["q1"]), mlp(params["q2"])


if __name__ == "__main__":
    # Small, deterministic example shapes.
    batch = 8
    state_dim = 12
    action_dim = 4
    hidden_dim = 32
    num_layers = 2  # args.num_layers

    key = jax.random.PRNGKey(0)
    k_params, k_state, k_action, k_bias = jax.random.split(key, 4)

    params = init_critic_params(k_params, state_dim, action_dim,
                                hidden_dim, num_layers)
    packed = pack_critic_params(params)

    state = jax.random.normal(k_state, (batch, state_dim), dtype=jnp.float32)
    action = jax.random.normal(k_action, (batch, action_dim), dtype=jnp.float32)

    q1, q2 = critic_forward(state, action, packed, num_layers=num_layers)
    jax.block_until_ready((q1, q2))

    q1_ref, q2_ref = _reference_forward(state, action, params)
    assert q1.shape == (batch, 1) and q2.shape == (batch, 1)
    assert jnp.allclose(q1, q1_ref, atol=1e-5, rtol=1e-5)
    assert jnp.allclose(q2, q2_ref, atol=1e-5, rtol=1e-5)

    # Extra check: non-zero biases, num_layers=1 (no hidden layer), and a
    # non-multiple-of-8 batch (exercises padding + bias packing paths).
    params1 = init_critic_params(k_params, state_dim, action_dim,
                                 hidden_dim, 1)
    for head in ("q1", "q2"):
        layers = []
        for (w, b) in params1[head]:
            k_bias, kb = jax.random.split(k_bias)
            layers.append((w, 0.1 * jax.random.normal(kb, b.shape, b.dtype)))
        params1[head] = layers
    packed1 = pack_critic_params(params1)
    state5 = state[:5]
    action5 = action[:5]
    q1b, q2b = critic_forward(state5, action5, packed1, num_layers=1)
    jax.block_until_ready((q1b, q2b))
    q1b_ref, q2b_ref = _reference_forward(state5, action5, params1)
    assert q1b.shape == (5, 1) and q2b.shape == (5, 1)
    assert jnp.allclose(q1b, q1b_ref, atol=1e-5, rtol=1e-5)
    assert jnp.allclose(q2b, q2b_ref, atol=1e-5, rtol=1e-5)

    print("KERNEL_OK")
</pallas_src>

<mosaic_0001>
module attributes {stable_mosaic.version = 11 : i64} {
  func.func @kernel(%arg0: i32, %arg1: memref<8x16xf32, #tpu.memory_space<vmem>>, %arg2: memref<2x16x32xf32, #tpu.memory_space<vmem>>, %arg3: memref<1x2x32x32xf32, #tpu.memory_space<vmem>>, %arg4: memref<2x32x128xf32, #tpu.memory_space<vmem>>, %arg5: memref<2x2x1x32xf32, #tpu.memory_space<vmem>>, %arg6: memref<1x128xf32, #tpu.memory_space<vmem>>, %arg7: memref<8x128xf32, #tpu.memory_space<vmem>>) attributes {dimension_semantics = [#tpu.dimension_semantics<arbitrary>], iteration_bounds = array<i64: 1>, scalar_prefetch = 0 : i64, scratch_operands = 0 : i64, tpu.core_type = #tpu.core_type<tc>, window_params = [{transform_indices = @transform_0, window_bounds = array<i64: 8, 16>}, {pipeline_mode = #tpu.pipeline_mode<synchronous>, transform_indices = @transform_1, window_bounds = array<i64: 2, 16, 32>}, {pipeline_mode = #tpu.pipeline_mode<synchronous>, transform_indices = @transform_2, window_bounds = array<i64: 1, 2, 32, 32>}, {pipeline_mode = #tpu.pipeline_mode<synchronous>, transform_indices = @transform_3, window_bounds = array<i64: 2, 32, 128>}, {pipeline_mode = #tpu.pipeline_mode<synchronous>, transform_indices = @transform_4, window_bounds = array<i64: 2, 2, 1, 32>}, {pipeline_mode = #tpu.pipeline_mode<synchronous>, transform_indices = @transform_5, window_bounds = array<i64: 1, 128>}, {transform_indices = @transform_6, window_bounds = array<i64: 8, 128>}]} {
    %c0 = arith.constant 0 : index
    %c0_0 = arith.constant 0 : index
    %0 = vector.load %arg1[%c0, %c0_0] : memref<8x16xf32, #tpu.memory_space<vmem>>, vector<8x16xf32>
    %c0_1 = arith.constant 0 : index
    %c0_2 = arith.constant 0 : index
    %1 = vector.load %arg6[%c0_1, %c0_2] : memref<1x128xf32, #tpu.memory_space<vmem>>, vector<1x128xf32>
    %c0_3 = arith.constant 0 : index
    %c0_4 = arith.constant 0 : index
    %c0_5 = arith.constant 0 : index
    %2 = vector.load %arg2[%c0_3, %c0_4, %c0_5] : memref<2x16x32xf32, #tpu.memory_space<vmem>>, vector<1x16x32xf32>
    %3 = vector.shape_cast %2 : vector<1x16x32xf32> to vector<16x32xf32>
    %cst = arith.constant dense<0.000000e+00> : vector<8x32xf32>
    %4 = tpu.matmul %0, %3, %cst {dimension_numbers = #tpu.dot_dimension_numbers<[1], [0], [0], [1], [0, 0, 1, 1], [], []>} : vector<8x16xf32>, vector<16x32xf32>, vector<8x32xf32> -> vector<8x32xf32>
    %c0_6 = arith.constant 0 : index
    %c0_7 = arith.constant 0 : index
    %c0_8 = arith.constant 0 : index
    %c0_9 = arith.constant 0 : index
    %5 = vector.load %arg5[%c0_6, %c0_7, %c0_8, %c0_9] : memref<2x2x1x32xf32, #tpu.memory_space<vmem>>, vector<1x1x1x32xf32>
    %6 = vector.shape_cast %5 : vector<1x1x1x32xf32> to vector<1x32xf32>
    %7 = vector.broadcast %6 : vector<1x32xf32> to vector<8x32xf32>
    %8 = arith.addf %4, %7 : vector<8x32xf32>
    %cst_10 = arith.constant 0.000000e+00 : f32
    %9 = vector.broadcast %cst_10 : f32 to vector<8x32xf32>
    %10 = arith.maximumf %8, %9 : vector<8x32xf32>
    %c0_11 = arith.constant 0 : index
    %c0_12 = arith.constant 0 : index
    %c0_13 = arith.constant 0 : index
    %c0_14 = arith.constant 0 : index
    %11 = vector.load %arg3[%c0_11, %c0_12, %c0_13, %c0_14] : memref<1x2x32x32xf32, #tpu.memory_space<vmem>>, vector<1x1x32x32xf32>
    %12 = vector.shape_cast %11 : vector<1x1x32x32xf32> to vector<32x32xf32>
    %cst_15 = arith.constant dense<0.000000e+00> : vector<8x32xf32>
    %13 = tpu.matmul %10, %12, %cst_15 {dimension_numbers = #tpu.dot_dimension_numbers<[1], [0], [0], [1], [0, 0, 1, 1], [], []>} : vector<8x32xf32>, vector<32x32xf32>, vector<8x32xf32> -> vector<8x32xf32>
    %c1 = arith.constant 1 : index
    %c0_16 = arith.constant 0 : index
    %c0_17 = arith.constant 0 : index
    %c0_18 = arith.constant 0 : index
    %14 = vector.load %arg5[%c1, %c0_16, %c0_17, %c0_18] : memref<2x2x1x32xf32, #tpu.memory_space<vmem>>, vector<1x1x1x32xf32>
    %15 = vector.shape_cast %14 : vector<1x1x1x32xf32> to vector<1x32xf32>
    %16 = vector.broadcast %15 : vector<1x32xf32> to vector<8x32xf32>
    %17 = arith.addf %13, %16 : vector<8x32xf32>
    %cst_19 = arith.constant 0.000000e+00 : f32
    %18 = vector.broadcast %cst_19 : f32 to vector<8x32xf32>
    %19 = arith.maximumf %17, %18 : vector<8x32xf32>
    %c0_20 = arith.constant 0 : index
    %c0_21 = arith.constant 0 : index
    %c0_22 = arith.constant 0 : index
    %20 = vector.load %arg4[%c0_20, %c0_21, %c0_22] : memref<2x32x128xf32, #tpu.memory_space<vmem>>, vector<1x32x128xf32>
    %21 = vector.shape_cast %20 : vector<1x32x128xf32> to vector<32x128xf32>
    %cst_23 = arith.constant dense<0.000000e+00> : vector<8x128xf32>
    %22 = tpu.matmul %19, %21, %cst_23 {dimension_numbers = #tpu.dot_dimension_numbers<[1], [0], [0], [1], [0, 0, 1, 1], [], []>} : vector<8x32xf32>, vector<32x128xf32>, vector<8x128xf32> -> vector<8x128xf32>
    %23 = vector.broadcast %1 : vector<1x128xf32> to vector<8x128xf32>
    %24 = arith.addf %23, %22 : vector<8x128xf32>
    %c1_24 = arith.constant 1 : index
    %c0_25 = arith.constant 0 : index
    %c0_26 = arith.constant 0 : index
    %25 = vector.load %arg2[%c1_24, %c0_25, %c0_26] : memref<2x16x32xf32, #tpu.memory_space<vmem>>, vector<1x16x32xf32>
    %26 = vector.shape_cast %25 : vector<1x16x32xf32> to vector<16x32xf32>
    %cst_27 = arith.constant dense<0.000000e+00> : vector<8x32xf32>
    %27 = tpu.matmul %0, %26, %cst_27 {dimension_numbers = #tpu.dot_dimension_numbers<[1], [0], [0], [1], [0, 0, 1, 1], [], []>} : vector<8x16xf32>, vector<16x32xf32>, vector<8x32xf32> -> vector<8x32xf32>
    %c0_28 = arith.constant 0 : index
    %c1_29 = arith.constant 1 : index
    %c0_30 = arith.constant 0 : index
    %c0_31 = arith.constant 0 : index
    %28 = vector.load %arg5[%c0_28, %c1_29, %c0_30, %c0_31] : memref<2x2x1x32xf32, #tpu.memory_space<vmem>>, vector<1x1x1x32xf32>
    %29 = vector.shape_cast %28 : vector<1x1x1x32xf32> to vector<1x32xf32>
    %30 = vector.broadcast %29 : vector<1x32xf32> to vector<8x32xf32>
    %31 = arith.addf %27, %30 : vector<8x32xf32>
    %cst_32 = arith.constant 0.000000e+00 : f32
    %32 = vector.broadcast %cst_32 : f32 to vector<8x32xf32>
    %33 = arith.maximumf %31, %32 : vector<8x32xf32>
    %c0_33 = arith.constant 0 : index
    %c1_34 = arith.constant 1 : index
    %c0_35 = arith.constant 0 : index
    %c0_36 = arith.constant 0 : index
    %34 = vector.load %arg3[%c0_33, %c1_34, %c0_35, %c0_36] : memref<1x2x32x32xf32, #tpu.memory_space<vmem>>, vector<1x1x32x32xf32>
    %35 = vector.shape_cast %34 : vector<1x1x32x32xf32> to vector<32x32xf32>
    %cst_37 = arith.constant dense<0.000000e+00> : vector<8x32xf32>
    %36 = tpu.matmul %33, %35, %cst_37 {dimension_numbers = #tpu.dot_dimension_numbers<[1], [0], [0], [1], [0, 0, 1, 1], [], []>} : vector<8x32xf32>, vector<32x32xf32>, vector<8x32xf32> -> vector<8x32xf32>
    %c1_38 = arith.constant 1 : index
    %c1_39 = arith.constant 1 : index
    %c0_40 = arith.constant 0 : index
    %c0_41 = arith.constant 0 : index
    %37 = vector.load %arg5[%c1_38, %c1_39, %c0_40, %c0_41] : memref<2x2x1x32xf32, #tpu.memory_space<vmem>>, vector<1x1x1x32xf32>
    %38 = vector.shape_cast %37 : vector<1x1x1x32xf32> to vector<1x32xf32>
    %39 = vector.broadcast %38 : vector<1x32xf32> to vector<8x32xf32>
    %40 = arith.addf %36, %39 : vector<8x32xf32>
    %cst_42 = arith.constant 0.000000e+00 : f32
    %41 = vector.broadcast %cst_42 : f32 to vector<8x32xf32>
    %42 = arith.maximumf %40, %41 : vector<8x32xf32>
    %c1_43 = arith.constant 1 : index
    %c0_44 = arith.constant 0 : index
    %c0_45 = arith.constant 0 : index
    %43 = vector.load %arg4[%c1_43, %c0_44, %c0_45] : memref<2x32x128xf32, #tpu.memory_space<vmem>>, vector<1x32x128xf32>
    %44 = vector.shape_cast %43 : vector<1x32x128xf32> to vector<32x128xf32>
    %cst_46 = arith.constant dense<0.000000e+00> : vector<8x128xf32>
    %45 = tpu.matmul %42, %44, %cst_46 {dimension_numbers = #tpu.dot_dimension_numbers<[1], [0], [0], [1], [0, 0, 1, 1], [], []>} : vector<8x32xf32>, vector<32x128xf32>, vector<8x128xf32> -> vector<8x128xf32>
    %46 = arith.addf %24, %45 : vector<8x128xf32>
    %c0_47 = arith.constant 0 : index
    %c0_48 = arith.constant 0 : index
    %47 = vector.load %arg7[%c0_47, %c0_48] : memref<8x128xf32, #tpu.memory_space<vmem>>, vector<8x128xf32>
    tpu.vector_store %arg7[%c0_47, %c0_48], %46 {strides = array<i32>} : memref<8x128xf32, #tpu.memory_space<vmem>>, vector<8x128xf32>,
    return
  }
  func.func @transform_0(%arg0: i32) -> (i32, i32) {
    %c0_i32 = arith.constant 0 : i32
    %c0_i32_0 = arith.constant 0 : i32
    return %arg0, %c0_i32 : i32, i32
  }
  func.func @transform_1(%arg0: i32) -> (i32, i32, i32) {
    %c0_i32 = arith.constant 0 : i32
    %c0_i32_0 = arith.constant 0 : i32
    %c0_i32_1 = arith.constant 0 : i32
    %c0_i32_2 = arith.constant 0 : i32
    return %c0_i32, %c0_i32_0, %c0_i32_1 : i32, i32, i32
  }
  func.func @transform_2(%arg0: i32) -> (i32, i32, i32, i32) {
    %c0_i32 = arith.constant 0 : i32
    %c0_i32_0 = arith.constant 0 : i32
    %c0_i32_1 = arith.constant 0 : i32
    %c0_i32_2 = arith.constant 0 : i32
    %c0_i32_3 = arith.constant 0 : i32
    return %c0_i32, %c0_i32_0, %c0_i32_1, %c0_i32_2 : i32, i32, i32, i32
  }
  func.func @transform_3(%arg0: i32) -> (i32, i32, i32) {
    %c0_i32 = arith.constant 0 : i32
    %c0_i32_0 = arith.constant 0 : i32
    %c0_i32_1 = arith.constant 0 : i32
    %c0_i32_2 = arith.constant 0 : i32
    return %c0_i32, %c0_i32_0, %c0_i32_1 : i32, i32, i32
  }
  func.func @transform_4(%arg0: i32) -> (i32, i32, i32, i32) {
    %c0_i32 = arith.constant 0 : i32
    %c0_i32_0 = arith.constant 0 : i32
    %c0_i32_1 = arith.constant 0 : i32
    %c0_i32_2 = arith.constant 0 : i32
    %c0_i32_3 = arith.constant 0 : i32
    return %c0_i32, %c0_i32_0, %c0_i32_1, %c0_i32_2 : i32, i32, i32, i32
  }
  func.func @transform_5(%arg0: i32) -> (i32, i32) {
    %c0_i32 = arith.constant 0 : i32
    %c0_i32_0 = arith.constant 0 : i32
    %c0_i32_1 = arith.constant 0 : i32
    return %c0_i32, %c0_i32_0 : i32, i32
  }
  func.func @transform_6(%arg0: i32) -> (i32, i32) {
    %c0_i32 = arith.constant 0 : i32
    %c0_i32_0 = arith.constant 0 : i32
    return %arg0, %c0_i32 : i32, i32
  }
}

</mosaic_0001>

<llo_original>
// kernel: critic_forward.1
$region0: #{critic_forward.1}
  #allocation0 [shape = 'u32[]', space=smem, size = 0x4, offset = 0x4, fixed_abs, tag = 'smem constant byte address 0x4 - core index']
  #allocation1 [shape = 'u32[144,128]{1,0:T(1,128)}', space=vmem, size = 0x12000, scoped, tag = 'internal scratch']
  %s0 = inlined_call_operand.vmem [shape: f32[8,16], index: 0, kind: input, shape index: {}]
  %s1 = inlined_call_operand.vmem [shape: f32[2,16,32], index: 1, kind: input, shape index: {}]
  %s2 = inlined_call_operand.hbm [shape: f32[1,2,32,32], index: 2, kind: input, shape index: {}]
  %s3 = inlined_call_operand.hbm [shape: f32[2,32,128], index: 3, kind: input, shape index: {}]
  %s4 = inlined_call_operand.vmem [shape: f32[2,2,1,32], index: 4, kind: input, shape index: {}]
  %s5 = inlined_call_operand.vmem [shape: f32[1,128], index: 5, kind: input, shape index: {}]
  %s6 = inlined_call_operand.vmem [shape: f32[8,128], index: 6, kind: output, shape index: {}]
  %s7 = sld [smem:[#allocation0]]
  $region42: #{critic_forward.1} parent=0
    _
  %s9 = ssub.s32 1, %s7
  %s10 = scalar_select 0, %s9, %s7
  $region1: #{critic_forward.1} parent=0
    #allocation2 [shape = 'u8[32768]{0}', space=vmem, size = 0x8000, scoped, tag = 'input window, operand 2, single buffered']
    #allocation3 [shape = 's32[1]{0}', space=sflag, size = 0x4, scoped, tag = 'scoped memory for critic_forward.1']
    #allocation4 [shape = 'u8[32768]{0}', space=vmem, size = 0x8000, scoped, tag = 'input window, operand 3, single buffered']
    #allocation5 [shape = 's32[1]{0}', space=sflag, size = 0x4, scoped, tag = 'scoped memory for critic_forward.1']
    %11 = vsyncpa [#allocation3], 0
    %12 = vsyncpa [#allocation5], 0
    // Predicated region
    $region2: #{critic_forward.1} parent=1 // pred_check
      _
    $region3: #{critic_forward.1} parent=1 // pred_check_branch
      %14 = sbr.rel (0) target = $region5
    $region4: #{critic_forward.1} parent=1 // pred_region
      _
    $region5: #{critic_forward.1} parent=1 // pred_fallthru
      _
    // Predicated region
    $region6: #{critic_forward.1} parent=1 // pred_check
      _
    $region7: #{critic_forward.1} parent=1 // pred_check_branch
      %16 = sbr.rel (0) target = $region9
    $region8: #{critic_forward.1} parent=1 // pred_region
      _
    $region9: #{critic_forward.1} parent=1 // pred_fallthru
      _
    // Predicated region
    $region10: #{critic_forward.1} parent=1 // pred_check
      _
    $region11: #{critic_forward.1} parent=1 // pred_check_branch
      %18 = sbr.rel (0) target = $region13
    $region12: #{critic_forward.1} parent=1 // pred_region
      %s20 = ssub.s32 1024, 1024
      %21 = vsyncadd [#allocation3], %s20
      %s22 = sshll.u32 [#allocation2], 4
      %s23 = int_to_ptr.vmem [resolvable:$true] %s22
      %28 = dma.hbm_to_vmem [thread:$0]  %s2, 1024, %s23, [#allocation3], 128, 128, 8
    $region13: #{critic_forward.1} parent=1 // pred_fallthru
      _
    // Predicated region
    $region14: #{critic_forward.1} parent=1 // pred_check
      _
    $region15: #{critic_forward.1} parent=1 // pred_check_branch
      %30 = sbr.rel (0) target = $region17
    $region16: #{critic_forward.1} parent=1 // pred_region
      %s32 = ssub.s32 1024, 1024
      %33 = vsyncadd [#allocation5], %s32
      %s34 = sshll.u32 [#allocation4], 4
      %s35 = int_to_ptr.vmem [resolvable:$true] %s34
      %40 = dma.hbm_to_vmem [thread:$0]  %s3, 1024, %s35, [#allocation5], 128, 128, 8
    $region17: #{critic_forward.1} parent=1 // pred_fallthru
      _
    // Predicated region
    $region18: #{critic_forward.1} parent=1 // pred_check
      _
    $region19: #{critic_forward.1} parent=1 // pred_check_branch
      %42 = sbr.rel (0) target = $region21
    $region20: #{critic_forward.1} parent=1 // pred_region
      _
    $region21: #{critic_forward.1} parent=1 // pred_fallthru
      _
    // Predicated region
    $region22: #{critic_forward.1} parent=1 // pred_check
      _
    $region23: #{critic_forward.1} parent=1 // pred_check_branch
      %44 = sbr.rel (0) target = $region25
    $region24: #{critic_forward.1} parent=1 // pred_region
      _
    $region25: #{critic_forward.1} parent=1 // pred_fallthru
      _
    // Predicated region
    $region26: #{critic_forward.1} parent=1 // pred_check
      _
    $region27: #{critic_forward.1} parent=1 // pred_check_branch
      %46 = sbr.rel (0) target = $region29
    $region28: #{critic_forward.1} parent=1 // pred_region
      %47 = dma.done [#allocation3], 1024
    $region29: #{critic_forward.1} parent=1 // pred_fallthru
      _
    // Predicated region
    $region30: #{critic_forward.1} parent=1 // pred_check
      _
    $region31: #{critic_forward.1} parent=1 // pred_check_branch
      %49 = sbr.rel (0) target = $region33
    $region32: #{critic_forward.1} parent=1 // pred_region
      %50 = dma.done [#allocation5], 1024
    $region33: #{critic_forward.1} parent=1 // pred_fallthru
      _
    %v51 = vld [vmem:[%s0] sm:$0xff]
    %v52 = vld [vmem:[%s5] sm:$0x1]
    %v53 = vld [vmem:[%s1] sm:$0xff]
    %v54 = vld [vmem:[%s1 + $0x8] sm:$0xff]
    %v55 = vld [vmem:[%s4] sm:$0x1]
    %v57 = vlaneseq
    %v58 = vshrl.u32 %v57, 7
    %v59 = vsub.s32 0, %v58
    %v60 = vrot.slane %v55, %v59
    %vm62 = vcmask 130048
    %v64 = vsel %vm62, %v51, 0
    %66 = vmatprep.subr.mxu0 0.0
    %67 = vmatpush1.msra.mxu0 %v53
    %68 = vmatprep.subr.mxu0 0.0
    %69 = vmatpush1.msra.mxu0 %v54
    %70 = vmatprep.subr.mxu0 0.0
    %71 = vmatpush1.msra.mxu0 0.0
    %72 = vmatprep.subr.mxu0 0.0
    %73 = vmatpush1.msra.mxu0 0.0
    %74 = vmatprep.subr.mxu0 0.0
    %75 = vmatpush1.msra.mxu0 0.0
    %76 = vmatprep.subr.mxu0 0.0
    %77 = vmatpush1.msra.mxu0 0.0
    %78 = vmatprep.subr.mxu0 0.0
    %79 = vmatpush1.msra.mxu0 0.0
    %80 = vmatprep.subr.mxu0 0.0
    %81 = vmatpush1.msra.mxu0 0.0
    %82 = vmatprep.subr.mxu0 0.0
    %83 = vmatpush1.msra.mxu0 0.0
    %84 = vmatprep.subr.mxu0 0.0
    %85 = vmatpush1.msra.mxu0 0.0
    %86 = vmatprep.subr.mxu0 0.0
    %87 = vmatpush1.msra.mxu0 0.0
    %88 = vmatprep.subr.mxu0 0.0
    %89 = vmatpush1.msra.mxu0 0.0
    %90 = vmatprep.subr.mxu0 0.0
    %91 = vmatpush1.msra.mxu0 0.0
    %92 = vmatprep.subr.mxu0 0.0
    %93 = vmatpush1.msra.mxu0 0.0
    %94 = vmatprep.subr.mxu0 0.0
    %95 = vmatpush1.msra.mxu0 0.0
    %96 = vmatprep.subr.mxu0 0.0
    %97 = vmatpush1.msra.mxu0 0.0
    %98 = vmatprep.subr.mxu0 0.0
    %99 = vmatpush1.msra.mxu0 0.0
    %100 = vmatprep.subr.mxu0 0.0
    %101 = vmatpush1.msra.mxu0 0.0
    %102 = vmatprep.subr.mxu0 0.0
    %103 = vmatpush1.msra.mxu0 0.0
    %104 = vmatprep.subr.mxu0 0.0
    %105 = vmatpush1.msra.mxu0 0.0
    %106 = vmatprep.subr.mxu0 0.0
    %107 = vmatpush1.msra.mxu0 0.0
    %108 = vmatprep.subr.mxu0 0.0
    %109 = vmatpush1.msra.mxu0 0.0
    %110 = vmatprep.subr.mxu0 0.0
    %111 = vmatpush1.msra.mxu0 0.0
    %112 = vmatprep.subr.mxu0 0.0
    %113 = vmatpush1.msra.mxu0 0.0
    %114 = vmatprep.subr.mxu0 0.0
    %115 = vmatpush1.msra.mxu0 0.0
    %116 = vmatprep.subr.mxu0 0.0
    %117 = vmatpush1.msra.mxu0 0.0
    %118 = vmatprep.subr.mxu0 0.0
    %119 = vmatpush1.msra.mxu0 0.0
    %120 = vmatprep.subr.mxu0 0.0
    %121 = vmatpush1.msra.mxu0 0.0
    %122 = vmatprep.subr.mxu0 0.0
    %123 = vmatpush1.msra.mxu0 0.0
    %124 = vmatprep.subr.mxu0 0.0
    %125 = vmatpush1.msra.mxu0 0.0
    %126 = vmatprep.subr.mxu0 0.0
    %127 = vmatpush1.msra.mxu0 0.0
    %128 = vmatprep.subr.mxu0 0.0
    %129 = vmatpush1.msra.mxu0 0.0
    %130 = vmatprep.mubr.f32.mxu0 0.0
    %131 = vmatmul.mubr.f32.gmra.mrb[0].mxu0 %v64
    %v132 = vpop.f32.mrb[0].mxu0
    %v133 = vadd.f32 %v60, %v132
    %v134 = vpop.f32.mrb[0].mxu0
    %135 = vdwg.mxu0
    %v136 = vmax.f32 %v133, 0.0
    %v137 = vld [vmem:[#allocation2] sm:$0xff]
    %v138 = vld [vmem:[#allocation2 + $0x8] sm:$0xff]
    %v139 = vld [vmem:[#allocation2 + $0x10] sm:$0xff]
    %v140 = vld [vmem:[#allocation2 + $0x18] sm:$0xff]
    %s141 = scalar_lea.vmem %s4, 2
    %v142 = vld [vmem:[%s141] sm:$0x1]
    %v144 = vlaneseq
    %v145 = vshrl.u32 %v144, 7
    %v146 = vsub.s32 0, %v145
    %v147 = vrot.slane %v142, %v146
    %vm149 = vcmask 261120
    %v151 = vsel %vm149, %v136, 0
    %153 = vmatprep.subr.mxu0 0.0
    %154 = vmatpush1.msra.mxu0 %v137
    %155 = vmatprep.subr.mxu0 0.0
    %156 = vmatpush1.msra.mxu0 %v138
    %157 = vmatprep.subr.mxu0 0.0
    %158 = vmatpush1.msra.mxu0 %v139
    %159 = vmatprep.subr.mxu0 0.0
    %160 = vmatpush1.msra.mxu0 %v140
    %161 = vmatprep.subr.mxu0 0.0
    %162 = vmatpush1.msra.mxu0 0.0
    %163 = vmatprep.subr.mxu0 0.0
    %164 = vmatpush1.msra.mxu0 0.0
    %165 = vmatprep.subr.mxu0 0.0
    %166 = vmatpush1.msra.mxu0 0.0
    %167 = vmatprep.subr.mxu0 0.0
    %168 = vmatpush1.msra.mxu0 0.0
    %169 = vmatprep.subr.mxu0 0.0
    %170 = vmatpush1.msra.mxu0 0.0
    %171 = vmatprep.subr.mxu0 0.0
    %172 = vmatpush1.msra.mxu0 0.0
    %173 = vmatprep.subr.mxu0 0.0
    %174 = vmatpush1.msra.mxu0 0.0
    %175 = vmatprep.subr.mxu0 0.0
    %176 = vmatpush1.msra.mxu0 0.0
    %177 = vmatprep.subr.mxu0 0.0
    %178 = vmatpush1.msra.mxu0 0.0
    %179 = vmatprep.subr.mxu0 0.0
    %180 = vmatpush1.msra.mxu0 0.0
    %181 = vmatprep.subr.mxu0 0.0
    %182 = vmatpush1.msra.mxu0 0.0
    %183 = vmatprep.subr.mxu0 0.0
    %184 = vmatpush1.msra.mxu0 0.0
    %185 = vmatprep.subr.mxu0 0.0
    %186 = vmatpush1.msra.mxu0 0.0
    %187 = vmatprep.subr.mxu0 0.0
    %188 = vmatpush1.msra.mxu0 0.0
    %189 = vmatprep.subr.mxu0 0.0
    %190 = vmatpush1.msra.mxu0 0.0
    %191 = vmatprep.subr.mxu0 0.0
    %192 = vmatpush1.msra.mxu0 0.0
    %193 = vmatprep.subr.mxu0 0.0
    %194 = vmatpush1.msra.mxu0 0.0
    %195 = vmatprep.subr.mxu0 0.0
    %196 = vmatpush1.msra.mxu0 0.0
    %197 = vmatprep.subr.mxu0 0.0
    %198 = vmatpush1.msra.mxu0 0.0
    %199 = vmatprep.subr.mxu0 0.0
    %200 = vmatpush1.msra.mxu0 0.0
    %201 = vmatprep.subr.mxu0 0.0
    %202 = vmatpush1.msra.mxu0 0.0
    %203 = vmatprep.subr.mxu0 0.0
    %204 = vmatpush1.msra.mxu0 0.0
    %205 = vmatprep.subr.mxu0 0.0
    %206 = vmatpush1.msra.mxu0 0.0
    %207 = vmatprep.subr.mxu0 0.0
    %208 = vmatpush1.msra.mxu0 0.0
    %209 = vmatprep.subr.mxu0 0.0
    %210 = vmatpush1.msra.mxu0 0.0
    %211 = vmatprep.subr.mxu0 0.0
    %212 = vmatpush1.msra.mxu0 0.0
    %213 = vmatprep.subr.mxu0 0.0
    %214 = vmatpush1.msra.mxu0 0.0
    %215 = vmatprep.subr.mxu0 0.0
    %216 = vmatpush1.msra.mxu0 0.0
    %217 = vmatprep.mubr.f32.mxu0 0.0
    %218 = vmatmul.mubr.f32.gmra.mrb[0].mxu0 %v151
    %v219 = vpop.f32.mrb[0].mxu0
    %v220 = vadd.f32 %v147, %v219
    %v221 = vpop.f32.mrb[0].mxu0
    %222 = vdwg.mxu0
    %v223 = vmax.f32 %v220, 0.0
    %v224 = vld [vmem:[#allocation4] sm:$0xff]
    %v225 = vld [vmem:[#allocation4 + $0x8] sm:$0xff]
    %v226 = vld [vmem:[#allocation4 + $0x10] sm:$0xff]
    %v227 = vld [vmem:[#allocation4 + $0x18] sm:$0xff]
    %v229 = vsel %vm149, %v223, 0
    %231 = vmatprep.subr.mxu0 0.0
    %232 = vmatpush1.msra.mxu0 %v224
    %233 = vmatprep.subr.mxu0 0.0
    %234 = vmatpush1.msra.mxu0 %v225
    %235 = vmatprep.subr.mxu0 0.0
    %236 = vmatpush1.msra.mxu0 %v226
    %237 = vmatprep.subr.mxu0 0.0
    %238 = vmatpush1.msra.mxu0 %v227
    %239 = vmatprep.subr.mxu0 0.0
    %240 = vmatpush1.msra.mxu0 0.0
    %241 = vmatprep.subr.mxu0 0.0
    %242 = vmatpush1.msra.mxu0 0.0
    %243 = vmatprep.subr.mxu0 0.0
    %244 = vmatpush1.msra.mxu0 0.0
    %245 = vmatprep.subr.mxu0 0.0
    %246 = vmatpush1.msra.mxu0 0.0
    %247 = vmatprep.subr.mxu0 0.0
    %248 = vmatpush1.msra.mxu0 0.0
    %249 = vmatprep.subr.mxu0 0.0
    %250 = vmatpush1.msra.mxu0 0.0
    %251 = vmatprep.subr.mxu0 0.0
    %252 = vmatpush1.msra.mxu0 0.0
    %253 = vmatprep.subr.mxu0 0.0
    %254 = vmatpush1.msra.mxu0 0.0
    %255 = vmatprep.subr.mxu0 0.0
    %256 = vmatpush1.msra.mxu0 0.0
    %257 = vmatprep.subr.mxu0 0.0
    %258 = vmatpush1.msra.mxu0 0.0
    %259 = vmatprep.subr.mxu0 0.0
    %260 = vmatpush1.msra.mxu0 0.0
    %261 = vmatprep.subr.mxu0 0.0
    %262 = vmatpush1.msra.mxu0 0.0
    %263 = vmatprep.subr.mxu0 0.0
    %264 = vmatpush1.msra.mxu0 0.0
    %265 = vmatprep.subr.mxu0 0.0
    %266 = vmatpush1.msra.mxu0 0.0
    %267 = vmatprep.subr.mxu0 0.0
    %268 = vmatpush1.msra.mxu0 0.0
    %269 = vmatprep.subr.mxu0 0.0
    %270 = vmatpush1.msra.mxu0 0.0
    %271 = vmatprep.subr.mxu0 0.0
    %272 = vmatpush1.msra.mxu0 0.0
    %273 = vmatprep.subr.mxu0 0.0
    %274 = vmatpush1.msra.mxu0 0.0
    %275 = vmatprep.subr.mxu0 0.0
    %276 = vmatpush1.msra.mxu0 0.0
    %277 = vmatprep.subr.mxu0 0.0
    %278 = vmatpush1.msra.mxu0 0.0
    %279 = vmatprep.subr.mxu0 0.0
    %280 = vmatpush1.msra.mxu0 0.0
    %281 = vmatprep.subr.mxu0 0.0
    %282 = vmatpush1.msra.mxu0 0.0
    %283 = vmatprep.subr.mxu0 0.0
    %284 = vmatpush1.msra.mxu0 0.0
    %285 = vmatprep.subr.mxu0 0.0
    %286 = vmatpush1.msra.mxu0 0.0
    %287 = vmatprep.subr.mxu0 0.0
    %288 = vmatpush1.msra.mxu0 0.0
    %289 = vmatprep.subr.mxu0 0.0
    %290 = vmatpush1.msra.mxu0 0.0
    %291 = vmatprep.subr.mxu0 0.0
    %292 = vmatpush1.msra.mxu0 0.0
    %293 = vmatprep.subr.mxu0 0.0
    %294 = vmatpush1.msra.mxu0 0.0
    %295 = vmatprep.mubr.f32.mxu0 0.0
    %296 = vmatmul.mubr.f32.gmra.mrb[0].mxu0 %v229
    %v297 = vpop.f32.mrb[0].mxu0
    %v298 = vadd.f32 0.0, %v297
    %v299 = vpop.f32.mrb[0].mxu0
    %300 = vdwg.mxu0
    %v302 = vlaneseq
    %v303 = vshrl.u32 %v302, 7
    %v304 = vsub.s32 0, %v303
    %v305 = vrot.slane %v52, %v304
    %v307 = vadd.f32 %v305, %v298
    %s308 = scalar_lea.vmem %s1, 16
    %v309 = vld [vmem:[%s308] sm:$0xff]
    %v310 = vld [vmem:[%s308 + $0x8] sm:$0xff]
    %s311 = scalar_lea.vmem %s4, 1
    %v312 = vld [vmem:[%s311] sm:$0x1]
    %v314 = vlaneseq
    %v315 = vshrl.u32 %v314, 7
    %v316 = vsub.s32 0, %v315
    %v317 = vrot.slane %v312, %v316
    %319 = vmatprep.subr.mxu0 0.0
    %320 = vmatpush1.msra.mxu0 %v309
    %321 = vmatprep.subr.mxu0 0.0
    %322 = vmatpush1.msra.mxu0 %v310
    %323 = vmatprep.subr.mxu0 0.0
    %324 = vmatpush1.msra.mxu0 0.0
    %325 = vmatprep.subr.mxu0 0.0
    %326 = vmatpush1.msra.mxu0 0.0
    %327 = vmatprep.subr.mxu0 0.0
    %328 = vmatpush1.msra.mxu0 0.0
    %329 = vmatprep.subr.mxu0 0.0
    %330 = vmatpush1.msra.mxu0 0.0
    %331 = vmatprep.subr.mxu0 0.0
    %332 = vmatpush1.msra.mxu0 0.0
    %333 = vmatprep.subr.mxu0 0.0
    %334 = vmatpush1.msra.mxu0 0.0
    %335 = vmatprep.subr.mxu0 0.0
    %336 = vmatpush1.msra.mxu0 0.0
    %337 = vmatprep.subr.mxu0 0.0
    %338 = vmatpush1.msra.mxu0 0.0
    %339 = vmatprep.subr.mxu0 0.0
    %340 = vmatpush1.msra.mxu0 0.0
    %341 = vmatprep.subr.mxu0 0.0
    %342 = vmatpush1.msra.mxu0 0.0
    %343 = vmatprep.subr.mxu0 0.0
    %344 = vmatpush1.msra.mxu0 0.0
    %345 = vmatprep.subr.mxu0 0.0
    %346 = vmatpush1.msra.mxu0 0.0
    %347 = vmatprep.subr.mxu0 0.0
    %348 = vmatpush1.msra.mxu0 0.0
    %349 = vmatprep.subr.mxu0 0.0
    %350 = vmatpush1.msra.mxu0 0.0
    %351 = vmatprep.subr.mxu0 0.0
    %352 = vmatpush1.msra.mxu0 0.0
    %353 = vmatprep.subr.mxu0 0.0
    %354 = vmatpush1.msra.mxu0 0.0
    %355 = vmatprep.subr.mxu0 0.0
    %356 = vmatpush1.msra.mxu0 0.0
    %357 = vmatprep.subr.mxu0 0.0
    %358 = vmatpush1.msra.mxu0 0.0
    %359 = vmatprep.subr.mxu0 0.0
    %360 = vmatpush1.msra.mxu0 0.0
    %361 = vmatprep.subr.mxu0 0.0
    %362 = vmatpush1.msra.mxu0 0.0
    %363 = vmatprep.subr.mxu0 0.0
    %364 = vmatpush1.msra.mxu0 0.0
    %365 = vmatprep.subr.mxu0 0.0
    %366 = vmatpush1.msra.mxu0 0.0
    %367 = vmatprep.subr.mxu0 0.0
    %368 = vmatpush1.msra.mxu0 0.0
    %369 = vmatprep.subr.mxu0 0.0
    %370 = vmatpush1.msra.mxu0 0.0
    %371 = vmatprep.subr.mxu0 0.0
    %372 = vmatpush1.msra.mxu0 0.0
    %373 = vmatprep.subr.mxu0 0.0
    %374 = vmatpush1.msra.mxu0 0.0
    %375 = vmatprep.subr.mxu0 0.0
    %376 = vmatpush1.msra.mxu0 0.0
    %377 = vmatprep.subr.mxu0 0.0
    %378 = vmatpush1.msra.mxu0 0.0
    %379 = vmatprep.subr.mxu0 0.0
    %380 = vmatpush1.msra.mxu0 0.0
    %381 = vmatprep.subr.mxu0 0.0
    %382 = vmatpush1.msra.mxu0 0.0
    %383 = vmatprep.mubr.f32.mxu0 0.0
    %384 = vmatmul.mubr.f32.gmra.mrb[0].mxu0 %v64
    %v385 = vpop.f32.mrb[0].mxu0
    %v386 = vadd.f32 %v317, %v385
    %v387 = vpop.f32.mrb[0].mxu0
    %388 = vdwg.mxu0
    %v389 = vmax.f32 %v386, 0.0
    %s390 = scalar_lea.vmem [#allocation2], 32
    %v391 = vld [vmem:[%s390] sm:$0xff]
    %v392 = vld [vmem:[%s390 + $0x8] sm:$0xff]
    %v393 = vld [vmem:[%s390 + $0x10] sm:$0xff]
    %v394 = vld [vmem:[%s390 + $0x18] sm:$0xff]
    %s395 = scalar_lea.vmem %s4, 3
    %v396 = vld [vmem:[%s395] sm:$0x1]
    %v398 = vlaneseq
    %v399 = vshrl.u32 %v398, 7
    %v400 = vsub.s32 0, %v399
    %v401 = vrot.slane %v396, %v400
    %v404 = vsel %vm149, %v389, 0
    %406 = vmatprep.subr.mxu0 0.0
    %407 = vmatpush1.msra.mxu0 %v391
    %408 = vmatprep.subr.mxu0 0.0
    %409 = vmatpush1.msra.mxu0 %v392
    %410 = vmatprep.subr.mxu0 0.0
    %411 = vmatpush1.msra.mxu0 %v393
    %412 = vmatprep.subr.mxu0 0.0
    %413 = vmatpush1.msra.mxu0 %v394
    %414 = vmatprep.subr.mxu0 0.0
    %415 = vmatpush1.msra.mxu0 0.0
    %416 = vmatprep.subr.mxu0 0.0
    %417 = vmatpush1.msra.mxu0 0.0
    %418 = vmatprep.subr.mxu0 0.0
    %419 = vmatpush1.msra.mxu0 0.0
    %420 = vmatprep.subr.mxu0 0.0
    %421 = vmatpush1.msra.mxu0 0.0
    %422 = vmatprep.subr.mxu0 0.0
    %423 = vmatpush1.msra.mxu0 0.0
    %424 = vmatprep.subr.mxu0 0.0
    %425 = vmatpush1.msra.mxu0 0.0
    %426 = vmatprep.subr.mxu0 0.0
    %427 = vmatpush1.msra.mxu0 0.0
    %428 = vmatprep.subr.mxu0 0.0
    %429 = vmatpush1.msra.mxu0 0.0
    %430 = vmatprep.subr.mxu0 0.0
    %431 = vmatpush1.msra.mxu0 0.0
    %432 = vmatprep.subr.mxu0 0.0
    %433 = vmatpush1.msra.mxu0 0.0
    %434 = vmatprep.subr.mxu0 0.0
    %435 = vmatpush1.msra.mxu0 0.0
    %436 = vmatprep.subr.mxu0 0.0
    %437 = vmatpush1.msra.mxu0 0.0
    %438 = vmatprep.subr.mxu0 0.0
    %439 = vmatpush1.msra.mxu0 0.0
    %440 = vmatprep.subr.mxu0 0.0
    %441 = vmatpush1.msra.mxu0 0.0
    %442 = vmatprep.subr.mxu0 0.0
    %443 = vmatpush1.msra.mxu0 0.0
    %444 = vmatprep.subr.mxu0 0.0
    %445 = vmatpush1.msra.mxu0 0.0
    %446 = vmatprep.subr.mxu0 0.0
    %447 = vmatpush1.msra.mxu0 0.0
    %448 = vmatprep.subr.mxu0 0.0
    %449 = vmatpush1.msra.mxu0 0.0
    %450 = vmatprep.subr.mxu0 0.0
    %451 = vmatpush1.msra.mxu0 0.0
    %452 = vmatprep.subr.mxu0 0.0
    %453 = vmatpush1.msra.mxu0 0.0
    %454 = vmatprep.subr.mxu0 0.0
    %455 = vmatpush1.msra.mxu0 0.0
    %456 = vmatprep.subr.mxu0 0.0
    %457 = vmatpush1.msra.mxu0 0.0
    %458 = vmatprep.subr.mxu0 0.0
    %459 = vmatpush1.msra.mxu0 0.0
    %460 = vmatprep.subr.mxu0 0.0
    %461 = vmatpush1.msra.mxu0 0.0
    %462 = vmatprep.subr.mxu0 0.0
    %463 = vmatpush1.msra.mxu0 0.0
    %464 = vmatprep.subr.mxu0 0.0
    %465 = vmatpush1.msra.mxu0 0.0
    %466 = vmatprep.subr.mxu0 0.0
    %467 = vmatpush1.msra.mxu0 0.0
    %468 = vmatprep.subr.mxu0 0.0
    %469 = vmatpush1.msra.mxu0 0.0
    %470 = vmatprep.mubr.f32.mxu0 0.0
    %471 = vmatmul.mubr.f32.gmra.mrb[0].mxu0 %v404
    %v472 = vpop.f32.mrb[0].mxu0
    %v473 = vadd.f32 %v401, %v472
    %v474 = vpop.f32.mrb[0].mxu0
    %475 = vdwg.mxu0
    %v476 = vmax.f32 %v473, 0.0
    %s477 = scalar_lea.vmem [#allocation4], 32
    %v478 = vld [vmem:[%s477] sm:$0xff]
    %v479 = vld [vmem:[%s477 + $0x8] sm:$0xff]
    %v480 = vld [vmem:[%s477 + $0x10] sm:$0xff]
    %v481 = vld [vmem:[%s477 + $0x18] sm:$0xff]
    %v483 = vsel %vm149, %v476, 0
    %485 = vmatprep.subr.mxu0 0.0
    %486 = vmatpush1.msra.mxu0 %v478
    %487 = vmatprep.subr.mxu0 0.0
    %488 = vmatpush1.msra.mxu0 %v479
    %489 = vmatprep.subr.mxu0 0.0
    %490 = vmatpush1.msra.mxu0 %v480
    %491 = vmatprep.subr.mxu0 0.0
    %492 = vmatpush1.msra.mxu0 %v481
    %493 = vmatprep.subr.mxu0 0.0
    %494 = vmatpush1.msra.mxu0 0.0
    %495 = vmatprep.subr.mxu0 0.0
    %496 = vmatpush1.msra.mxu0 0.0
    %497 = vmatprep.subr.mxu0 0.0
    %498 = vmatpush1.msra.mxu0 0.0
    %499 = vmatprep.subr.mxu0 0.0
    %500 = vmatpush1.msra.mxu0 0.0
    %501 = vmatprep.subr.mxu0 0.0
    %502 = vmatpush1.msra.mxu0 0.0
    %503 = vmatprep.subr.mxu0 0.0
    %504 = vmatpush1.msra.mxu0 0.0
    %505 = vmatprep.subr.mxu0 0.0
    %506 = vmatpush1.msra.mxu0 0.0
    %507 = vmatprep.subr.mxu0 0.0
    %508 = vmatpush1.msra.mxu0 0.0
    %509 = vmatprep.subr.mxu0 0.0
    %510 = vmatpush1.msra.mxu0 0.0
    %511 = vmatprep.subr.mxu0 0.0
    %512 = vmatpush1.msra.mxu0 0.0
    %513 = vmatprep.subr.mxu0 0.0
    %514 = vmatpush1.msra.mxu0 0.0
    %515 = vmatprep.subr.mxu0 0.0
    %516 = vmatpush1.msra.mxu0 0.0
    %517 = vmatprep.subr.mxu0 0.0
    %518 = vmatpush1.msra.mxu0 0.0
    %519 = vmatprep.subr.mxu0 0.0
    %520 = vmatpush1.msra.mxu0 0.0
    %521 = vmatprep.subr.mxu0 0.0
    %522 = vmatpush1.msra.mxu0 0.0
    %523 = vmatprep.subr.mxu0 0.0
    %524 = vmatpush1.msra.mxu0 0.0
    %525 = vmatprep.subr.mxu0 0.0
    %526 = vmatpush1.msra.mxu0 0.0
    %527 = vmatprep.subr.mxu0 0.0
    %528 = vmatpush1.msra.mxu0 0.0
    %529 = vmatprep.subr.mxu0 0.0
    %530 = vmatpush1.msra.mxu0 0.0
    %531 = vmatprep.subr.mxu0 0.0
    %532 = vmatpush1.msra.mxu0 0.0
    %533 = vmatprep.subr.mxu0 0.0
    %534 = vmatpush1.msra.mxu0 0.0
    %535 = vmatprep.subr.mxu0 0.0
    %536 = vmatpush1.msra.mxu0 0.0
    %537 = vmatprep.subr.mxu0 0.0
    %538 = vmatpush1.msra.mxu0 0.0
    %539 = vmatprep.subr.mxu0 0.0
    %540 = vmatpush1.msra.mxu0 0.0
    %541 = vmatprep.subr.mxu0 0.0
    %542 = vmatpush1.msra.mxu0 0.0
    %543 = vmatprep.subr.mxu0 0.0
    %544 = vmatpush1.msra.mxu0 0.0
    %545 = vmatprep.subr.mxu0 0.0
    %546 = vmatpush1.msra.mxu0 0.0
    %547 = vmatprep.subr.mxu0 0.0
    %548 = vmatpush1.msra.mxu0 0.0
    %549 = vmatprep.mubr.f32.mxu0 0.0
    %550 = vmatmul.mubr.f32.gmra.mrb[0].mxu0 %v483
    %v551 = vpop.f32.mrb[0].mxu0
    %v552 = vadd.f32 0.0, %v551
    %v553 = vpop.f32.mrb[0].mxu0
    %554 = vdwg.mxu0
    %v555 = vadd.f32 %v307, %v552
    %556 = vst [vmem:[%s6] sm:$0xff] %v555
    // Predicated region
    $region34: #{critic_forward.1} parent=1 // pred_check
      _
    $region35: #{critic_forward.1} parent=1 // pred_check_branch
      %558 = sbr.rel (0) target = $region37
    $region36: #{critic_forward.1} parent=1 // pred_region
      _
    $region37: #{critic_forward.1} parent=1 // pred_fallthru
      _
    // Predicated region
    $region38: #{critic_forward.1} parent=1 // pred_check
      _
    $region39: #{critic_forward.1} parent=1 // pred_check_branch
      %560 = sbr.rel (0) target = $region41
    $region40: #{critic_forward.1} parent=1 // pred_region
      _
    $region41: #{critic_forward.1} parent=1 // pred_fallthru
      _
    %561 = vsyncpa [#allocation3], 1
    %562 = vsyncpa [#allocation5], 1

</llo_original>
